<compile_context>
chip_gen: v6e
topology: v6e:2x2x1
jax: 0.10.0
libtpu: 0.0.40
codegen_flags: <defaults>
</compile_context>

<pallas_src>
import functools

import jax
import jax.numpy as jnp
from jax.experimental import pallas as pl
from jax.experimental.pallas import tpu as pltpu

HIDDEN = 64          # per-head hidden width (as in the PyTorch module)
H2 = 2 * HIDDEN      # fused hidden width = 128 (exactly one lane group)
OUT_W = 128          # lane-dense packed output width
MAX_BM = 1024        # max batch rows per grid step


def _round_up(x, m):
    return (x + m - 1) // m * m


def actor_critic_kernel(x_ref, p_ref, out_ref, *, state_dim, s_pad, action_dim):
    """Fused forward: one [*,128] layer-1 matmul + one [128,128] layer-2 matmul.

    Parameter slab layout (rows, all 128 lanes wide, f32):
      [0          : s_pad      )  W1  (fused actor|critic first-layer weight)
      [s_pad      : s_pad+8    )  b1  (row 0 holds the bias, rest zero pad)
      [s_pad+8    : s_pad+136  )  W2  (block-diagonal, zero-padded to 128 cols)
      [s_pad+136  : s_pad+144  )  b2  (row 0 holds the bias, rest zero pad)
    """
    x = x_ref[...]                                            # [bm, state_dim]
    if state_dim != s_pad:
        # Zero-pad the contraction dim in VMEM (free VPU work) instead of
        # materializing a padded copy of the whole rollout in HBM.
        x = jnp.concatenate(
            [x, jnp.zeros((x.shape[0], s_pad - state_dim), x.dtype)], axis=-1)

    w1 = p_ref[0:s_pad, :]                                    # [s_pad, 128]
    b1 = p_ref[s_pad:s_pad + 1, :]                            # [1, 128]
    w2 = p_ref[s_pad + 8:s_pad + 8 + H2, :]                   # [128, 128]
    b2 = p_ref[s_pad + 8 + H2:s_pad + 8 + H2 + 1, :]          # [1, 128]

    hi = jax.lax.Precision.HIGHEST  # exact-f32 MXU passes; kernel is not MXU-bound

    # Fused layer 1: actor hidden in lanes [0:64), critic hidden in [64:128).
    h = jnp.dot(x, w1, preferred_element_type=jnp.float32, precision=hi) + b1
    h = jnp.maximum(h, 0.0)                                   # [bm, 128]

    # Fused layer 2 (block-diagonal): lanes [0:A) = actor logits,
    # lane A = critic value, lanes (A:128) = exactly zero (zero weight+bias).
    z = jnp.dot(h, w2, preferred_element_type=jnp.float32, precision=hi) + b2

    # Masked softmax over the logit lanes only; keep value lane untouched.
    col = jax.lax.broadcasted_iota(jnp.int32, z.shape, 1)
    is_logit = col < action_dim
    m = jnp.max(jnp.where(is_logit, z, -jnp.inf), axis=-1, keepdims=True)
    e = jnp.where(is_logit, jnp.exp(z - m), 0.0)
    inv = pl.reciprocal(jnp.sum(e, axis=-1, keepdims=True), approx=False)
    out_ref[...] = jnp.where(is_logit, e * inv, z)            # one dense store


def pack_params(params, state_dim, action_dim, hidden=HIDDEN):
    """Pack the 8 PyTorch-layout tensors into one [s_pad+144, 128] f32 slab."""
    assert hidden == HIDDEN and action_dim + 1 <= OUT_W
    wa1, ba1, wa2, ba2, wc1, bc1, wc2, bc2 = params
    s_pad = _round_up(state_dim, 8)

    w1 = jnp.zeros((s_pad, H2), jnp.float32)
    w1 = w1.at[:state_dim, :hidden].set(wa1)       # actor layer-1 weight
    w1 = w1.at[:state_dim, hidden:].set(wc1)       # critic layer-1 weight
    b1 = jnp.zeros((8, H2), jnp.float32)
    b1 = b1.at[0, :hidden].set(ba1[0])
    b1 = b1.at[0, hidden:].set(bc1[0])

    w2 = jnp.zeros((H2, OUT_W), jnp.float32)
    w2 = w2.at[:hidden, :action_dim].set(wa2)                       # actor head
    w2 = w2.at[hidden:, action_dim:action_dim + 1].set(wc2)         # critic head
    b2 = jnp.zeros((8, OUT_W), jnp.float32)
    b2 = b2.at[0, :action_dim].set(ba2[0])
    b2 = b2.at[0, action_dim].set(bc2[0, 0])

    return jnp.concatenate([w1, b1, w2, b2], axis=0)   # [s_pad + 144, 128]


def _choose_bm(B, s_pad):
    """Batch rows per grid step (multiple of 8).

    Large tiles amortize the ~0.35 us/step grid overhead; the cap keeps the
    explicit double-buffered blocks (x tile + out tile) to a few MiB so the
    kernel fits every generation's scoped-VMEM budget with room for Mosaic's
    own [bm, 128] temporaries.
    """
    row_bytes = 4 * (s_pad + OUT_W)                    # one x row + one out row
    cap = (6 * 1024 * 1024) // (2 * row_bytes)         # ~6 MiB of explicit blocks
    cap = max(8, min(MAX_BM, cap // 8 * 8))
    if B <= 256:
        return min(_round_up(B, 8), cap)               # tiny batch: one step
    # >= 4 grid steps so v7x's two TensorCores each see >= 2 pipelined steps.
    return max(8, min(cap, _round_up(pl.cdiv(B, 4), 8)))


def actor_critic_forward(x, slab, *, state_dim, action_dim):
    """Returns (probs [B, action_dim], value [B, 1])."""
    B = x.shape[0]
    assert x.shape[1] == state_dim
    s_pad = _round_up(state_dim, 8)

    bm = _choose_bm(B, s_pad)
    n_tiles = pl.cdiv(B, bm)
    b_pad = n_tiles * bm          # output rows are padded; tail rows sliced off

    kernel = functools.partial(actor_critic_kernel, state_dim=state_dim,
                               s_pad=s_pad, action_dim=action_dim)
    out = pl.pallas_call(
        kernel,
        out_shape=jax.ShapeDtypeStruct((b_pad, OUT_W), jnp.float32),
        grid=(n_tiles,),
        in_specs=[
            # x is passed UNPADDED; last tile's OOB rows are read-clipped.
            pl.BlockSpec((bm, state_dim), lambda i: (i, 0)),
            # Whole parameter slab; constant block index -> stays resident.
            pl.BlockSpec(slab.shape, lambda i: (0, 0)),
        ],
        out_specs=pl.BlockSpec((bm, OUT_W), lambda i: (i, 0)),
        compiler_params=pltpu.CompilerParams(
            dimension_semantics=("parallel",),
            vmem_limit_bytes=32 * 1024 * 1024),
    )(x, slab)

    probs = out[:B, :action_dim]
    value = out[:B, action_dim:action_dim + 1]
    return probs, value


def init_params(key, state_dim, action_dim, hidden=HIDDEN):
    """Deterministic PyTorch-style Linear init: U(-1/sqrt(fan_in), 1/sqrt(fan_in))."""
    def linear(k, fan_in, fan_out):
        kw, kb = jax.random.split(k)
        bound = 1.0 / jnp.sqrt(jnp.float32(fan_in))
        w = jax.random.uniform(kw, (fan_in, fan_out), jnp.float32, -bound, bound)
        b = jax.random.uniform(kb, (1, fan_out), jnp.float32, -bound, bound)
        return w, b

    k1, k2, k3, k4 = jax.random.split(key, 4)
    wa1, ba1 = linear(k1, state_dim, hidden)      # actor layer 1
    wa2, ba2 = linear(k2, hidden, action_dim)     # actor layer 2
    wc1, bc1 = linear(k3, state_dim, hidden)      # critic layer 1
    wc2, bc2 = linear(k4, hidden, 1)              # critic layer 2
    return (wa1, ba1, wa2, ba2, wc1, bc1, wc2, bc2)


if __name__ == "__main__":
    key = jax.random.PRNGKey(0)
    k_params, k_x1, k_x2 = jax.random.split(key, 3)

    state_dim, action_dim = 16, 4
    params = init_params(k_params, state_dim, action_dim)
    slab = pack_params(params, state_dim, action_dim)
    wa1, ba1, wa2, ba2, wc1, bc1, wc2, bc2 = params

    def reference(x):
        hi = jax.lax.Precision.HIGHEST
        ha = jnp.maximum(jnp.dot(x, wa1, precision=hi) + ba1, 0.0)
        probs = jax.nn.softmax(jnp.dot(ha, wa2, precision=hi) + ba2, axis=-1)
        hc = jnp.maximum(jnp.dot(x, wc1, precision=hi) + bc1, 0.0)
        value = jnp.dot(hc, wc2, precision=hi) + bc2
        return probs, value

    # Case 1: tiny exact-fit batch (single grid step).
    # Case 2: batch not divisible by the tile -> multi-step cdiv grid with a
    #         read-clipped tail tile (the path the old `bm = B` fallback broke).
    for B, kx in ((8, k_x1), (300, k_x2)):
        x = jax.random.normal(kx, (B, state_dim), dtype=jnp.float32)
        probs, value = actor_critic_forward(x, slab, state_dim=state_dim,
                                            action_dim=action_dim)
        jax.block_until_ready((probs, value))

        probs_ref, value_ref = reference(x)
        assert probs.shape == (B, action_dim) and value.shape == (B, 1)
        assert jnp.allclose(probs, probs_ref, atol=1e-5)
        assert jnp.allclose(value, value_ref, atol=1e-5)
        assert jnp.allclose(jnp.sum(probs, axis=-1), 1.0, atol=1e-5)

    print("KERNEL_OK")
</pallas_src>

<mosaic_0001>
module attributes {stable_mosaic.version = 11 : i64} {
  func.func @actor_critic_kernel(%arg0: i32, %arg1: memref<8x16xf32, #tpu.memory_space<vmem>>, %arg2: memref<160x128xf32, #tpu.memory_space<vmem>>, %arg3: memref<8x128xf32, #tpu.memory_space<vmem>>) attributes {dimension_semantics = [#tpu.dimension_semantics<parallel>], iteration_bounds = array<i64: 1>, scalar_prefetch = 0 : i64, scratch_operands = 0 : i64, tpu.core_type = #tpu.core_type<tc>, window_params = [{transform_indices = @transform_0, window_bounds = array<i64: 8, 16>}, {pipeline_mode = #tpu.pipeline_mode<synchronous>, transform_indices = @transform_1, window_bounds = array<i64: 160, 128>}, {transform_indices = @transform_2, window_bounds = array<i64: 8, 128>}]} {
    %c0 = arith.constant 0 : index
    %c0_0 = arith.constant 0 : index
    %0 = vector.load %arg1[%c0, %c0_0] : memref<8x16xf32, #tpu.memory_space<vmem>>, vector<8x16xf32>
    %c0_1 = arith.constant 0 : index
    %c0_2 = arith.constant 0 : index
    %1 = vector.load %arg2[%c0_1, %c0_2] : memref<160x128xf32, #tpu.memory_space<vmem>>, vector<16x128xf32>
    %c16 = arith.constant 16 : index
    %c0_3 = arith.constant 0 : index
    %2 = vector.load %arg2[%c16, %c0_3] : memref<160x128xf32, #tpu.memory_space<vmem>>, vector<1x128xf32>
    %c24 = arith.constant 24 : index
    %c0_4 = arith.constant 0 : index
    %3 = vector.load %arg2[%c24, %c0_4] : memref<160x128xf32, #tpu.memory_space<vmem>>, vector<128x128xf32>
    %c152 = arith.constant 152 : index
    %c0_5 = arith.constant 0 : index
    %4 = vector.load %arg2[%c152, %c0_5] : memref<160x128xf32, #tpu.memory_space<vmem>>, vector<1x128xf32>
    %cst = arith.constant dense<0.000000e+00> : vector<8x128xf32>
    %5 = tpu.matmul %0, %1, %cst {dimension_numbers = #tpu.dot_dimension_numbers<[1], [0], [0], [1], [0, 0, 1, 1], [], []>, precision = #tpu.contract_precision<fp32>} : vector<8x16xf32>, vector<16x128xf32>, vector<8x128xf32> -> vector<8x128xf32>
    %6 = vector.broadcast %2 : vector<1x128xf32> to vector<8x128xf32>
    %7 = arith.addf %5, %6 : vector<8x128xf32>
    %cst_6 = arith.constant 0.000000e+00 : f32
    %8 = vector.broadcast %cst_6 : f32 to vector<8x128xf32>
    %9 = arith.maximumf %7, %8 : vector<8x128xf32>
    %cst_7 = arith.constant dense<0.000000e+00> : vector<8x128xf32>
    %10 = tpu.matmul %9, %3, %cst_7 {dimension_numbers = #tpu.dot_dimension_numbers<[1], [0], [0], [1], [0, 0, 1, 1], [], []>, precision = #tpu.contract_precision<fp32>} : vector<8x128xf32>, vector<128x128xf32>, vector<8x128xf32> -> vector<8x128xf32>
    %11 = vector.broadcast %4 : vector<1x128xf32> to vector<8x128xf32>
    %12 = arith.addf %10, %11 : vector<8x128xf32>
    %13 = tpu.iota {dimensions = array<i32: 1>} : vector<8x128xi32>
    %c4_i32 = arith.constant 4 : i32
    %14 = vector.broadcast %c4_i32 : i32 to vector<8x128xi32>
    %15 = arith.cmpi slt, %13, %14 : vector<8x128xi32>
    %cst_8 = arith.constant 0xFF800000 : f32
    %16 = vector.broadcast %cst_8 : f32 to vector<8x128xf32>
    %17 = arith.select %15, %12, %16 : vector<8x128xi1>, vector<8x128xf32>
    %cst_9 = arith.constant dense<0xFF800000> : vector<8xf32>
    %18 = vector.multi_reduction <maximumf>, %17, %cst_9 [1] : vector<8x128xf32> to vector<8xf32>
    %19 = vector.shape_cast %18 : vector<8xf32> to vector<8x1xf32>
    %20 = vector.broadcast %19 : vector<8x1xf32> to vector<8x128xf32>
    %21 = arith.subf %12, %20 : vector<8x128xf32>
    %22 = math.exp %21 : vector<8x128xf32>
    %cst_10 = arith.constant 0.000000e+00 : f32
    %23 = vector.broadcast %cst_10 : f32 to vector<8x128xf32>
    %24 = arith.select %15, %22, %23 : vector<8x128xi1>, vector<8x128xf32>
    %cst_11 = arith.constant dense<0.000000e+00> : vector<8xf32>
    %25 = vector.multi_reduction <add>, %24, %cst_11 [1] : vector<8x128xf32> to vector<8xf32>
    %26 = vector.shape_cast %25 : vector<8xf32> to vector<8x1xf32>
    %27 = tpu.reciprocal %26 : vector<8x1xf32> -> vector<8x1xf32>
    %28 = vector.broadcast %27 : vector<8x1xf32> to vector<8x128xf32>
    %29 = arith.mulf %24, %28 : vector<8x128xf32>
    %30 = arith.select %15, %29, %12 : vector<8x128xi1>, vector<8x128xf32>
    %c0_12 = arith.constant 0 : index
    %c0_13 = arith.constant 0 : index
    %31 = vector.load %arg3[%c0_12, %c0_13] : memref<8x128xf32, #tpu.memory_space<vmem>>, vector<8x128xf32>
    tpu.vector_store %arg3[%c0_12, %c0_13], %30 {strides = array<i32>} : memref<8x128xf32, #tpu.memory_space<vmem>>, vector<8x128xf32>,
    return
  }
  func.func @transform_0(%arg0: i32) -> (i32, i32) {
    %c0_i32 = arith.constant 0 : i32
    %c0_i32_0 = arith.constant 0 : i32
    return %arg0, %c0_i32 : i32, i32
  }
  func.func @transform_1(%arg0: i32) -> (i32, i32) {
    %c0_i32 = arith.constant 0 : i32
    %c0_i32_0 = arith.constant 0 : i32
    %c0_i32_1 = arith.constant 0 : i32
    return %c0_i32, %c0_i32_0 : i32, i32
  }
  func.func @transform_2(%arg0: i32) -> (i32, i32) {
    %c0_i32 = arith.constant 0 : i32
    %c0_i32_0 = arith.constant 0 : i32
    return %arg0, %c0_i32 : i32, i32
  }
}

</mosaic_0001>

<llo_original>
// kernel: tpu_custom_call.1
$region0: #{tpu_custom_call.1}
  #allocation0 [shape = 'u32[]', space=smem, size = 0x4, offset = 0x4, fixed_abs, tag = 'smem constant byte address 0x4 - core index']
  #allocation1 [shape = 'u32[144,128]{1,0:T(1,128)}', space=vmem, size = 0x12000, scoped, tag = 'internal scratch']
  %s0 = inlined_call_operand.hbm [shape: f32[8,16], index: 0, kind: input, shape index: {}]
  %s1 = inlined_call_operand.hbm [shape: f32[160,128], index: 1, kind: input, shape index: {}]
  %s2 = inlined_call_operand.hbm [shape: f32[8,128], index: 2, kind: output, shape index: {}]
  %s3 = sld [smem:[#allocation0]]
  $region26: #{tpu_custom_call.1} parent=0
    _
  %s5 = ssub.s32 1, %s3
  %s6 = scalar_select 0, %s5, %s3
  $region1: #{tpu_custom_call.1} parent=0
    #allocation2 [shape = 'u8[4096]{0}', space=vmem, size = 0x1000, scoped, tag = 'input window, operand 0, single buffered']
    #allocation3 [shape = 's32[1]{0}', space=sflag, size = 0x4, scoped, tag = 'scoped memory for tpu_custom_call.1']
    #allocation4 [shape = 's32[1]{0}', space=sflag, size = 0x4, scoped, tag = 'scoped memory for tpu_custom_call.1']
    #allocation5 [shape = 'u8[81920]{0}', space=vmem, size = 0x14000, scoped, tag = 'input window, operand 1, single buffered']
    #allocation6 [shape = 's32[1]{0}', space=sflag, size = 0x4, scoped, tag = 'scoped memory for tpu_custom_call.1']
    #allocation7 [shape = 'u8[4096]{0}', space=vmem, size = 0x1000, scoped, tag = 'output window, operand 0, single buffered']
    %7 = vsyncpa [#allocation3], 0
    %8 = vsyncpa [#allocation6], 0
    %9 = vsyncpa [#allocation4], 0
    // Predicated region
    $region2: #{tpu_custom_call.1} parent=1 // pred_check
      _
    $region3: #{tpu_custom_call.1} parent=1 // pred_check_branch
      %11 = sbr.rel (0) target = $region5
    $region4: #{tpu_custom_call.1} parent=1 // pred_region
      %s13 = ssub.s32 128, 128
      %14 = vsyncadd [#allocation3], %s13
      %s16 = sshll.u32 [#allocation2], 4
      %s17 = int_to_ptr.vmem [resolvable:$true] %s16
      %19 = dma.hbm_to_vmem [thread:$0]  %s0, 128, %s17, [#allocation3]
    $region5: #{tpu_custom_call.1} parent=1 // pred_fallthru
      _
    // Predicated region
    $region6: #{tpu_custom_call.1} parent=1 // pred_check
      _
    $region7: #{tpu_custom_call.1} parent=1 // pred_check_branch
      %21 = sbr.rel (0) target = $region9
    $region8: #{tpu_custom_call.1} parent=1 // pred_region
      %s23 = ssub.s32 2560, 2560
      %24 = vsyncadd [#allocation6], %s23
      %s25 = sshll.u32 [#allocation5], 4
      %s26 = int_to_ptr.vmem [resolvable:$true] %s25
      %31 = dma.hbm_to_vmem [thread:$0]  %s1, 2560, %s26, [#allocation6], 128, 128, 8
    $region9: #{tpu_custom_call.1} parent=1 // pred_fallthru
      _
    // Predicated region
    $region10: #{tpu_custom_call.1} parent=1 // pred_check
      _
    $region11: #{tpu_custom_call.1} parent=1 // pred_check_branch
      %33 = sbr.rel (0) target = $region13
    $region12: #{tpu_custom_call.1} parent=1 // pred_region
      %34 = dma.done [#allocation3], 128
    $region13: #{tpu_custom_call.1} parent=1 // pred_fallthru
      _
    // Predicated region
    $region14: #{tpu_custom_call.1} parent=1 // pred_check
      _
    $region15: #{tpu_custom_call.1} parent=1 // pred_check_branch
      %36 = sbr.rel (0) target = $region17
    $region16: #{tpu_custom_call.1} parent=1 // pred_region
      %37 = dma.done [#allocation6], 2560
    $region17: #{tpu_custom_call.1} parent=1 // pred_fallthru
      _
    %v38 = vld [vmem:[#allocation2] sm:$0xff]
    %v39 = vld [vmem:[#allocation5] sm:$0xff]
    %v40 = vld [vmem:[#allocation5 + $0x8] sm:$0xff]
    %v41 = vld [vmem:[#allocation5 + $0x10] sm:$0x1]
    %v42 = vld [vmem:[#allocation5 + $0x18] sm:$0xff]
    %v43 = vld [vmem:[#allocation5 + $0x20] sm:$0xff]
    %v44 = vld [vmem:[#allocation5 + $0x28] sm:$0xff]
    %v45 = vld [vmem:[#allocation5 + $0x30] sm:$0xff]
    %v46 = vld [vmem:[#allocation5 + $0x38] sm:$0xff]
    %v47 = vld [vmem:[#allocation5 + $0x40] sm:$0xff]
    %v48 = vld [vmem:[#allocation5 + $0x48] sm:$0xff]
    %v49 = vld [vmem:[#allocation5 + $0x50] sm:$0xff]
    %v50 = vld [vmem:[#allocation5 + $0x58] sm:$0xff]
    %v51 = vld [vmem:[#allocation5 + $0x60] sm:$0xff]
    %v52 = vld [vmem:[#allocation5 + $0x68] sm:$0xff]
    %v53 = vld [vmem:[#allocation5 + $0x70] sm:$0xff]
    %v54 = vld [vmem:[#allocation5 + $0x78] sm:$0xff]
    %v55 = vld [vmem:[#allocation5 + $0x80] sm:$0xff]
    %v56 = vld [vmem:[#allocation5 + $0x88] sm:$0xff]
    %v57 = vld [vmem:[#allocation5 + $0x90] sm:$0xff]
    %v58 = vld [vmem:[#allocation5 + $0x98] sm:$0x1]
    %v59 = vlaneseq
    %v60 = vshrl.u32 %v59, 7
    %v61 = vsub.s32 0, %v60
    %v62 = vrot.slane %v41, %v61
    %vm63 = vcmask 130048
    %v65 = vsel %vm63, %v38, 0
    %67 = vmatprep.subr.mxu0 0.0
    %68 = vmatpush1.msra.mxu0 0.0
    %69 = vmatprep.subr.mxu0 0.0
    %70 = vmatpush1.msra.mxu0 0.0
    %71 = vmatprep.subr.mxu0 0.0
    %72 = vmatpush1.msra.mxu0 0.0
    %73 = vmatprep.subr.mxu0 0.0
    %74 = vmatpush1.msra.mxu0 0.0
    %75 = vmatprep.subr.mxu0 0.0
    %76 = vmatpush1.msra.mxu0 0.0
    %77 = vmatprep.subr.mxu0 0.0
    %78 = vmatpush1.msra.mxu0 0.0
    %79 = vmatprep.subr.mxu0 0.0
    %80 = vmatpush1.msra.mxu0 0.0
    %81 = vmatprep.subr.mxu0 0.0
    %82 = vmatpush1.msra.mxu0 0.0
    %83 = vmatprep.subr.mxu0 0.0
    %84 = vmatpush1.msra.mxu0 0.0
    %85 = vmatprep.subr.mxu0 0.0
    %86 = vmatpush1.msra.mxu0 0.0
    %87 = vmatprep.subr.mxu0 0.0
    %88 = vmatpush1.msra.mxu0 0.0
    %89 = vmatprep.subr.mxu0 0.0
    %90 = vmatpush1.msra.mxu0 0.0
    %91 = vmatprep.subr.mxu0 0.0
    %92 = vmatpush1.msra.mxu0 0.0
    %93 = vmatprep.subr.mxu0 0.0
    %94 = vmatpush1.msra.mxu0 0.0
    %95 = vmatprep.subr.mxu0 0.0
    %v96 = vand.u32 %v40, 4294901760
    %97 = vmatpush1.msra.mxu0 %v96
    %98 = vmatprep.subr.mxu0 0.0
    %v99 = vand.u32 %v39, 4294901760
    %100 = vmatpush1.msra.mxu0 %v99
    %101 = vmatprep.subr.mxu0 0.0
    %102 = vmatpush2.msra.mxu0 0.0
    %103 = vmatprep.subr.mxu0 0.0
    %104 = vmatpush2.msra.mxu0 0.0
    %105 = vmatprep.subr.mxu0 0.0
    %106 = vmatpush2.msra.mxu0 0.0
    %107 = vmatprep.subr.mxu0 0.0
    %108 = vmatpush2.msra.mxu0 0.0
    %109 = vmatprep.subr.mxu0 0.0
    %110 = vmatpush2.msra.mxu0 0.0
    %111 = vmatprep.subr.mxu0 0.0
    %112 = vmatpush2.msra.mxu0 0.0
    %113 = vmatprep.subr.mxu0 0.0
    %114 = vmatpush2.msra.mxu0 0.0
    %115 = vmatprep.subr.mxu0 0.0
    %116 = vmatpush2.msra.mxu0 0.0
    %117 = vmatprep.subr.mxu0 0.0
    %118 = vmatpush2.msra.mxu0 0.0
    %119 = vmatprep.subr.mxu0 0.0
    %120 = vmatpush2.msra.mxu0 0.0
    %121 = vmatprep.subr.mxu0 0.0
    %122 = vmatpush2.msra.mxu0 0.0
    %123 = vmatprep.subr.mxu0 0.0
    %124 = vmatpush2.msra.mxu0 0.0
    %125 = vmatprep.subr.mxu0 0.0
    %126 = vmatpush2.msra.mxu0 0.0
    %127 = vmatprep.subr.mxu0 0.0
    %128 = vmatpush2.msra.mxu0 0.0
    %129 = vmatprep.subr.mxu0 0.0
    %130 = vmatpush2.msra.mxu0 0.0
    %131 = vmatprep.subr.mxu0 0.0
    %132 = vmatpush2.msra.mxu0 0.0
    %133 = vmatprep.mubr.f32.mxu0 0.0
    %v134 = vand.u32 %v65, 4294901760
    %v135 = vsub.f32 %v65, %v134
    %v136 = vand.u32 %v135, 4294901760
    %v137 = vsub.f32 %v135, %v136
    %v138 = vand.u32 %v137, 4294901760
    %139 = vmatmul.mubr.f32.gmra.mxu0 %v138
    %v140 = vpop.f32.mrf.mxu0
    %v141 = vadd.f32 %v62, %v140
    %v142 = vpop.f32.mrf.mxu0
    %143 = vdwg.mxu0
    %144 = vmatprep.subr.mxu0 0.0
    %145 = vmatpush1.msra.mxu0 0.0
    %146 = vmatprep.subr.mxu0 0.0
    %147 = vmatpush1.msra.mxu0 0.0
    %148 = vmatprep.subr.mxu0 0.0
    %149 = vmatpush1.msra.mxu0 0.0
    %150 = vmatprep.subr.mxu0 0.0
    %151 = vmatpush1.msra.mxu0 0.0
    %152 = vmatprep.subr.mxu0 0.0
    %153 = vmatpush1.msra.mxu0 0.0
    %154 = vmatprep.subr.mxu0 0.0
    %155 = vmatpush1.msra.mxu0 0.0
    %156 = vmatprep.subr.mxu0 0.0
    %157 = vmatpush1.msra.mxu0 0.0
    %158 = vmatprep.subr.mxu0 0.0
    %159 = vmatpush1.msra.mxu0 0.0
    %160 = vmatprep.subr.mxu0 0.0
    %161 = vmatpush1.msra.mxu0 0.0
    %162 = vmatprep.subr.mxu0 0.0
    %163 = vmatpush1.msra.mxu0 0.0
    %164 = vmatprep.subr.mxu0 0.0
    %165 = vmatpush1.msra.mxu0 0.0
    %166 = vmatprep.subr.mxu0 0.0
    %167 = vmatpush1.msra.mxu0 0.0
    %168 = vmatprep.subr.mxu0 0.0
    %169 = vmatpush1.msra.mxu0 0.0
    %170 = vmatprep.subr.mxu0 0.0
    %171 = vmatpush1.msra.mxu0 0.0
    %172 = vmatprep.subr.mxu0 0.0
    %v173 = vand.u32 %v40, 4294901760
    %v174 = vsub.f32 %v40, %v173
    %v175 = vand.u32 %v174, 4294901760
    %v176 = vsub.f32 %v174, %v175
    %v177 = vand.u32 %v176, 4294901760
    %178 = vmatpush1.msra.mxu0 %v177
    %179 = vmatprep.subr.mxu0 0.0
    %v180 = vand.u32 %v39, 4294901760
    %v181 = vsub.f32 %v39, %v180
    %v182 = vand.u32 %v181, 4294901760
    %v183 = vsub.f32 %v181, %v182
    %v184 = vand.u32 %v183, 4294901760
    %185 = vmatpush1.msra.mxu0 %v184
    %186 = vmatprep.subr.mxu0 0.0
    %187 = vmatpush2.msra.mxu0 0.0
    %188 = vmatprep.subr.mxu0 0.0
    %189 = vmatpush2.msra.mxu0 0.0
    %190 = vmatprep.subr.mxu0 0.0
    %191 = vmatpush2.msra.mxu0 0.0
    %192 = vmatprep.subr.mxu0 0.0
    %193 = vmatpush2.msra.mxu0 0.0
    %194 = vmatprep.subr.mxu0 0.0
    %195 = vmatpush2.msra.mxu0 0.0
    %196 = vmatprep.subr.mxu0 0.0
    %197 = vmatpush2.msra.mxu0 0.0
    %198 = vmatprep.subr.mxu0 0.0
    %199 = vmatpush2.msra.mxu0 0.0
    %200 = vmatprep.subr.mxu0 0.0
    %201 = vmatpush2.msra.mxu0 0.0
    %202 = vmatprep.subr.mxu0 0.0
    %203 = vmatpush2.msra.mxu0 0.0
    %204 = vmatprep.subr.mxu0 0.0
    %205 = vmatpush2.msra.mxu0 0.0
    %206 = vmatprep.subr.mxu0 0.0
    %207 = vmatpush2.msra.mxu0 0.0
    %208 = vmatprep.subr.mxu0 0.0
    %209 = vmatpush2.msra.mxu0 0.0
    %210 = vmatprep.subr.mxu0 0.0
    %211 = vmatpush2.msra.mxu0 0.0
    %212 = vmatprep.subr.mxu0 0.0
    %213 = vmatpush2.msra.mxu0 0.0
    %214 = vmatprep.subr.mxu0 0.0
    %215 = vmatpush2.msra.mxu0 0.0
    %216 = vmatprep.subr.mxu0 0.0
    %217 = vmatpush2.msra.mxu0 0.0
    %218 = vmatprep.mubr.f32.mxu0 0.0
    %v219 = vand.u32 %v65, 4294901760
    %220 = vmatmul.mubr.f32.gmra.mxu0 %v219
    %v221 = vpop.f32.mrf.mxu0
    %v222 = vadd.f32 %v141, %v221
    %v223 = vpop.f32.mrf.mxu0
    %224 = vdwg.mxu0
    %225 = vmatprep.subr.mxu0 0.0
    %226 = vmatpush1.msra.mxu0 0.0
    %227 = vmatprep.subr.mxu0 0.0
    %228 = vmatpush1.msra.mxu0 0.0
    %229 = vmatprep.subr.mxu0 0.0
    %230 = vmatpush1.msra.mxu0 0.0
    %231 = vmatprep.subr.mxu0 0.0
    %232 = vmatpush1.msra.mxu0 0.0
    %233 = vmatprep.subr.mxu0 0.0
    %234 = vmatpush1.msra.mxu0 0.0
    %235 = vmatprep.subr.mxu0 0.0
    %236 = vmatpush1.msra.mxu0 0.0
    %237 = vmatprep.subr.mxu0 0.0
    %238 = vmatpush1.msra.mxu0 0.0
    %239 = vmatprep.subr.mxu0 0.0
    %240 = vmatpush1.msra.mxu0 0.0
    %241 = vmatprep.subr.mxu0 0.0
    %242 = vmatpush1.msra.mxu0 0.0
    %243 = vmatprep.subr.mxu0 0.0
    %244 = vmatpush1.msra.mxu0 0.0
    %245 = vmatprep.subr.mxu0 0.0
    %246 = vmatpush1.msra.mxu0 0.0
    %247 = vmatprep.subr.mxu0 0.0
    %248 = vmatpush1.msra.mxu0 0.0
    %249 = vmatprep.subr.mxu0 0.0
    %250 = vmatpush1.msra.mxu0 0.0
    %251 = vmatprep.subr.mxu0 0.0
    %252 = vmatpush1.msra.mxu0 0.0
    %253 = vmatprep.subr.mxu0 0.0
    %v254 = vand.u32 %v40, 4294901760
    %v255 = vsub.f32 %v40, %v254
    %256 = vmatpush1.msra.mxu0 %v255
    %257 = vmatprep.subr.mxu0 0.0
    %v258 = vand.u32 %v39, 4294901760
    %v259 = vsub.f32 %v39, %v258
    %260 = vmatpush1.msra.mxu0 %v259
    %261 = vmatprep.subr.mxu0 0.0
    %262 = vmatpush2.msra.mxu0 0.0
    %263 = vmatprep.subr.mxu0 0.0
    %264 = vmatpush2.msra.mxu0 0.0
    %265 = vmatprep.subr.mxu0 0.0
    %266 = vmatpush2.msra.mxu0 0.0
    %267 = vmatprep.subr.mxu0 0.0
    %268 = vmatpush2.msra.mxu0 0.0
    %269 = vmatprep.subr.mxu0 0.0
    %270 = vmatpush2.msra.mxu0 0.0
    %271 = vmatprep.subr.mxu0 0.0
    %272 = vmatpush2.msra.mxu0 0.0
    %273 = vmatprep.subr.mxu0 0.0
    %274 = vmatpush2.msra.mxu0 0.0
    %275 = vmatprep.subr.mxu0 0.0
    %276 = vmatpush2.msra.mxu0 0.0
    %277 = vmatprep.subr.mxu0 0.0
    %278 = vmatpush2.msra.mxu0 0.0
    %279 = vmatprep.subr.mxu0 0.0
    %280 = vmatpush2.msra.mxu0 0.0
    %281 = vmatprep.subr.mxu0 0.0
    %282 = vmatpush2.msra.mxu0 0.0
    %283 = vmatprep.subr.mxu0 0.0
    %284 = vmatpush2.msra.mxu0 0.0
    %285 = vmatprep.subr.mxu0 0.0
    %286 = vmatpush2.msra.mxu0 0.0
    %287 = vmatprep.subr.mxu0 0.0
    %288 = vmatpush2.msra.mxu0 0.0
    %289 = vmatprep.subr.mxu0 0.0
    %290 = vmatpush2.msra.mxu0 0.0
    %291 = vmatprep.subr.mxu0 0.0
    %292 = vmatpush2.msra.mxu0 0.0
    %293 = vmatprep.mubr.f32.mxu0 0.0
    %v294 = vand.u32 %v65, 4294901760
    %v295 = vsub.f32 %v65, %v294
    %296 = vmatmul.mubr.f32.gmra.mxu0 %v295
    %v297 = vpop.f32.mrf.mxu0
    %v298 = vadd.f32 %v222, %v297
    %v299 = vpop.f32.mrf.mxu0
    %300 = vdwg.mxu0
    %301 = vmatprep.subr.mxu0 0.0
    %302 = vmatpush1.msra.mxu0 0.0
    %303 = vmatprep.subr.mxu0 0.0
    %304 = vmatpush1.msra.mxu0 0.0
    %305 = vmatprep.subr.mxu0 0.0
    %306 = vmatpush1.msra.mxu0 0.0
    %307 = vmatprep.subr.mxu0 0.0
    %308 = vmatpush1.msra.mxu0 0.0
    %309 = vmatprep.subr.mxu0 0.0
    %310 = vmatpush1.msra.mxu0 0.0
    %311 = vmatprep.subr.mxu0 0.0
    %312 = vmatpush1.msra.mxu0 0.0
    %313 = vmatprep.subr.mxu0 0.0
    %314 = vmatpush1.msra.mxu0 0.0
    %315 = vmatprep.subr.mxu0 0.0
    %316 = vmatpush1.msra.mxu0 0.0
    %317 = vmatprep.subr.mxu0 0.0
    %318 = vmatpush1.msra.mxu0 0.0
    %319 = vmatprep.subr.mxu0 0.0
    %320 = vmatpush1.msra.mxu0 0.0
    %321 = vmatprep.subr.mxu0 0.0
    %322 = vmatpush1.msra.mxu0 0.0
    %323 = vmatprep.subr.mxu0 0.0
    %324 = vmatpush1.msra.mxu0 0.0
    %325 = vmatprep.subr.mxu0 0.0
    %326 = vmatpush1.msra.mxu0 0.0
    %327 = vmatprep.subr.mxu0 0.0
    %328 = vmatpush1.msra.mxu0 0.0
    %329 = vmatprep.subr.mxu0 0.0
    %v330 = vand.u32 %v40, 4294901760
    %331 = vmatpush1.msra.mxu0 %v330
    %332 = vmatprep.subr.mxu0 0.0
    %v333 = vand.u32 %v39, 4294901760
    %334 = vmatpush1.msra.mxu0 %v333
    %335 = vmatprep.subr.mxu0 0.0
    %336 = vmatpush2.msra.mxu0 0.0
    %337 = vmatprep.subr.mxu0 0.0
    %338 = vmatpush2.msra.mxu0 0.0
    %339 = vmatprep.subr.mxu0 0.0
    %340 = vmatpush2.msra.mxu0 0.0
    %341 = vmatprep.subr.mxu0 0.0
    %342 = vmatpush2.msra.mxu0 0.0
    %343 = vmatprep.subr.mxu0 0.0
    %344 = vmatpush2.msra.mxu0 0.0
    %345 = vmatprep.subr.mxu0 0.0
    %346 = vmatpush2.msra.mxu0 0.0
    %347 = vmatprep.subr.mxu0 0.0
    %348 = vmatpush2.msra.mxu0 0.0
    %349 = vmatprep.subr.mxu0 0.0
    %350 = vmatpush2.msra.mxu0 0.0
    %351 = vmatprep.subr.mxu0 0.0
    %352 = vmatpush2.msra.mxu0 0.0
    %353 = vmatprep.subr.mxu0 0.0
    %354 = vmatpush2.msra.mxu0 0.0
    %355 = vmatprep.subr.mxu0 0.0
    %356 = vmatpush2.msra.mxu0 0.0
    %357 = vmatprep.subr.mxu0 0.0
    %358 = vmatpush2.msra.mxu0 0.0
    %359 = vmatprep.subr.mxu0 0.0
    %360 = vmatpush2.msra.mxu0 0.0
    %361 = vmatprep.subr.mxu0 0.0
    %362 = vmatpush2.msra.mxu0 0.0
    %363 = vmatprep.subr.mxu0 0.0
    %364 = vmatpush2.msra.mxu0 0.0
    %365 = vmatprep.subr.mxu0 0.0
    %366 = vmatpush2.msra.mxu0 0.0
    %367 = vmatprep.mubr.f32.mxu0 0.0
    %v368 = vand.u32 %v65, 4294901760
    %v369 = vsub.f32 %v65, %v368
    %v370 = vand.u32 %v369, 4294901760
    %371 = vmatmul.mubr.f32.gmra.mxu0 %v370
    %v372 = vpop.f32.mrf.mxu0
    %v373 = vadd.f32 %v298, %v372
    %v374 = vpop.f32.mrf.mxu0
    %375 = vdwg.mxu0
    %376 = vmatprep.subr.mxu0 0.0
    %377 = vmatpush1.msra.mxu0 0.0
    %378 = vmatprep.subr.mxu0 0.0
    %379 = vmatpush1.msra.mxu0 0.0
    %380 = vmatprep.subr.mxu0 0.0
    %381 = vmatpush1.msra.mxu0 0.0
    %382 = vmatprep.subr.mxu0 0.0
    %383 = vmatpush1.msra.mxu0 0.0
    %384 = vmatprep.subr.mxu0 0.0
    %385 = vmatpush1.msra.mxu0 0.0
    %386 = vmatprep.subr.mxu0 0.0
    %387 = vmatpush1.msra.mxu0 0.0
    %388 = vmatprep.subr.mxu0 0.0
    %389 = vmatpush1.msra.mxu0 0.0
    %390 = vmatprep.subr.mxu0 0.0
    %391 = vmatpush1.msra.mxu0 0.0
    %392 = vmatprep.subr.mxu0 0.0
    %393 = vmatpush1.msra.mxu0 0.0
    %394 = vmatprep.subr.mxu0 0.0
    %395 = vmatpush1.msra.mxu0 0.0
    %396 = vmatprep.subr.mxu0 0.0
    %397 = vmatpush1.msra.mxu0 0.0
    %398 = vmatprep.subr.mxu0 0.0
    %399 = vmatpush1.msra.mxu0 0.0
    %400 = vmatprep.subr.mxu0 0.0
    %401 = vmatpush1.msra.mxu0 0.0
    %402 = vmatprep.subr.mxu0 0.0
    %403 = vmatpush1.msra.mxu0 0.0
    %404 = vmatprep.subr.mxu0 0.0
    %v405 = vand.u32 %v40, 4294901760
    %v406 = vsub.f32 %v40, %v405
    %v407 = vand.u32 %v406, 4294901760
    %408 = vmatpush1.msra.mxu0 %v407
    %409 = vmatprep.subr.mxu0 0.0
    %v410 = vand.u32 %v39, 4294901760
    %v411 = vsub.f32 %v39, %v410
    %v412 = vand.u32 %v411, 4294901760
    %413 = vmatpush1.msra.mxu0 %v412
    %414 = vmatprep.subr.mxu0 0.0
    %415 = vmatpush2.msra.mxu0 0.0
    %416 = vmatprep.subr.mxu0 0.0
    %417 = vmatpush2.msra.mxu0 0.0
    %418 = vmatprep.subr.mxu0 0.0
    %419 = vmatpush2.msra.mxu0 0.0
    %420 = vmatprep.subr.mxu0 0.0
    %421 = vmatpush2.msra.mxu0 0.0
    %422 = vmatprep.subr.mxu0 0.0
    %423 = vmatpush2.msra.mxu0 0.0
    %424 = vmatprep.subr.mxu0 0.0
    %425 = vmatpush2.msra.mxu0 0.0
    %426 = vmatprep.subr.mxu0 0.0
    %427 = vmatpush2.msra.mxu0 0.0
    %428 = vmatprep.subr.mxu0 0.0
    %429 = vmatpush2.msra.mxu0 0.0
    %430 = vmatprep.subr.mxu0 0.0
    %431 = vmatpush2.msra.mxu0 0.0
    %432 = vmatprep.subr.mxu0 0.0
    %433 = vmatpush2.msra.mxu0 0.0
    %434 = vmatprep.subr.mxu0 0.0
    %435 = vmatpush2.msra.mxu0 0.0
    %436 = vmatprep.subr.mxu0 0.0
    %437 = vmatpush2.msra.mxu0 0.0
    %438 = vmatprep.subr.mxu0 0.0
    %439 = vmatpush2.msra.mxu0 0.0
    %440 = vmatprep.subr.mxu0 0.0
    %441 = vmatpush2.msra.mxu0 0.0
    %442 = vmatprep.subr.mxu0 0.0
    %443 = vmatpush2.msra.mxu0 0.0
    %444 = vmatprep.subr.mxu0 0.0
    %445 = vmatpush2.msra.mxu0 0.0
    %446 = vmatprep.mubr.f32.mxu0 0.0
    %v447 = vand.u32 %v65, 4294901760
    %448 = vmatmul.mubr.f32.gmra.mxu0 %v447
    %v449 = vpop.f32.mrf.mxu0
    %v450 = vadd.f32 %v373, %v449
    %v451 = vpop.f32.mrf.mxu0
    %452 = vdwg.mxu0
    %453 = vmatprep.subr.mxu0 0.0
    %454 = vmatpush1.msra.mxu0 0.0
    %455 = vmatprep.subr.mxu0 0.0
    %456 = vmatpush1.msra.mxu0 0.0
    %457 = vmatprep.subr.mxu0 0.0
    %458 = vmatpush1.msra.mxu0 0.0
    %459 = vmatprep.subr.mxu0 0.0
    %460 = vmatpush1.msra.mxu0 0.0
    %461 = vmatprep.subr.mxu0 0.0
    %462 = vmatpush1.msra.mxu0 0.0
    %463 = vmatprep.subr.mxu0 0.0
    %464 = vmatpush1.msra.mxu0 0.0
    %465 = vmatprep.subr.mxu0 0.0
    %466 = vmatpush1.msra.mxu0 0.0
    %467 = vmatprep.subr.mxu0 0.0
    %468 = vmatpush1.msra.mxu0 0.0
    %469 = vmatprep.subr.mxu0 0.0
    %470 = vmatpush1.msra.mxu0 0.0
    %471 = vmatprep.subr.mxu0 0.0
    %472 = vmatpush1.msra.mxu0 0.0
    %473 = vmatprep.subr.mxu0 0.0
    %474 = vmatpush1.msra.mxu0 0.0
    %475 = vmatprep.subr.mxu0 0.0
    %476 = vmatpush1.msra.mxu0 0.0
    %477 = vmatprep.subr.mxu0 0.0
    %478 = vmatpush1.msra.mxu0 0.0
    %479 = vmatprep.subr.mxu0 0.0
    %480 = vmatpush1.msra.mxu0 0.0
    %481 = vmatprep.subr.mxu0 0.0
    %v482 = vand.u32 %v40, 4294901760
    %483 = vmatpush1.msra.mxu0 %v482
    %484 = vmatprep.subr.mxu0 0.0
    %v485 = vand.u32 %v39, 4294901760
    %486 = vmatpush1.msra.mxu0 %v485
    %487 = vmatprep.subr.mxu0 0.0
    %488 = vmatpush2.msra.mxu0 0.0
    %489 = vmatprep.subr.mxu0 0.0
    %490 = vmatpush2.msra.mxu0 0.0
    %491 = vmatprep.subr.mxu0 0.0
    %492 = vmatpush2.msra.mxu0 0.0
    %493 = vmatprep.subr.mxu0 0.0
    %494 = vmatpush2.msra.mxu0 0.0
    %495 = vmatprep.subr.mxu0 0.0
    %496 = vmatpush2.msra.mxu0 0.0
    %497 = vmatprep.subr.mxu0 0.0
    %498 = vmatpush2.msra.mxu0 0.0
    %499 = vmatprep.subr.mxu0 0.0
    %500 = vmatpush2.msra.mxu0 0.0
    %501 = vmatprep.subr.mxu0 0.0
    %502 = vmatpush2.msra.mxu0 0.0
    %503 = vmatprep.subr.mxu0 0.0
    %504 = vmatpush2.msra.mxu0 0.0
    %505 = vmatprep.subr.mxu0 0.0
    %506 = vmatpush2.msra.mxu0 0.0
    %507 = vmatprep.subr.mxu0 0.0
    %508 = vmatpush2.msra.mxu0 0.0
    %509 = vmatprep.subr.mxu0 0.0
    %510 = vmatpush2.msra.mxu0 0.0
    %511 = vmatprep.subr.mxu0 0.0
    %512 = vmatpush2.msra.mxu0 0.0
    %513 = vmatprep.subr.mxu0 0.0
    %514 = vmatpush2.msra.mxu0 0.0
    %515 = vmatprep.subr.mxu0 0.0
    %516 = vmatpush2.msra.mxu0 0.0
    %517 = vmatprep.subr.mxu0 0.0
    %518 = vmatpush2.msra.mxu0 0.0
    %519 = vmatprep.mubr.f32.mxu0 0.0
    %v520 = vand.u32 %v65, 4294901760
    %521 = vmatmul.mubr.f32.gmra.mxu0 %v520
    %v522 = vpop.f32.mrf.mxu0
    %v523 = vadd.f32 %v450, %v522
    %v524 = vpop.f32.mrf.mxu0
    %525 = vdwg.mxu0
    %v526 = vmax.f32 %v523, 0.0
    %v527 = vlaneseq
    %v528 = vshrl.u32 %v527, 7
    %v529 = vsub.s32 0, %v528
    %v530 = vrot.slane %v58, %v529
    %531 = vmatprep.subr.mxu0 0.0
    %v532 = vand.u32 %v57, 4294901760
    %533 = vmatpush1.msra.mxu0 %v532
    %534 = vmatprep.subr.mxu0 0.0
    %v535 = vand.u32 %v56, 4294901760
    %536 = vmatpush1.msra.mxu0 %v535
    %537 = vmatprep.subr.mxu0 0.0
    %v538 = vand.u32 %v55, 4294901760
    %539 = vmatpush1.msra.mxu0 %v538
    %540 = vmatprep.subr.mxu0 0.0
    %v541 = vand.u32 %v54, 4294901760
    %542 = vmatpush1.msra.mxu0 %v541
    %543 = vmatprep.subr.mxu0 0.0
    %v544 = vand.u32 %v53, 4294901760
    %545 = vmatpush1.msra.mxu0 %v544
    %546 = vmatprep.subr.mxu0 0.0
    %v547 = vand.u32 %v52, 4294901760
    %548 = vmatpush1.msra.mxu0 %v547
    %549 = vmatprep.subr.mxu0 0.0
    %v550 = vand.u32 %v51, 4294901760
    %551 = vmatpush1.msra.mxu0 %v550
    %552 = vmatprep.subr.mxu0 0.0
    %v553 = vand.u32 %v50, 4294901760
    %554 = vmatpush1.msra.mxu0 %v553
    %555 = vmatprep.subr.mxu0 0.0
    %v556 = vand.u32 %v49, 4294901760
    %557 = vmatpush1.msra.mxu0 %v556
    %558 = vmatprep.subr.mxu0 0.0
    %v559 = vand.u32 %v48, 4294901760
    %560 = vmatpush1.msra.mxu0 %v559
    %561 = vmatprep.subr.mxu0 0.0
    %v562 = vand.u32 %v47, 4294901760
    %563 = vmatpush1.msra.mxu0 %v562
    %564 = vmatprep.subr.mxu0 0.0
    %v565 = vand.u32 %v46, 4294901760
    %566 = vmatpush1.msra.mxu0 %v565
    %567 = vmatprep.subr.mxu0 0.0
    %v568 = vand.u32 %v45, 4294901760
    %569 = vmatpush1.msra.mxu0 %v568
    %570 = vmatprep.subr.mxu0 0.0
    %v571 = vand.u32 %v44, 4294901760
    %572 = vmatpush1.msra.mxu0 %v571
    %573 = vmatprep.subr.mxu0 0.0
    %v574 = vand.u32 %v43, 4294901760
    %575 = vmatpush1.msra.mxu0 %v574
    %576 = vmatprep.subr.mxu0 0.0
    %v577 = vand.u32 %v42, 4294901760
    %578 = vmatpush1.msra.mxu0 %v577
    %579 = vmatprep.subr.mxu0 0.0
    %580 = vmatpush2.msra.mxu0 0.0
    %581 = vmatprep.subr.mxu0 0.0
    %582 = vmatpush2.msra.mxu0 0.0
    %583 = vmatprep.subr.mxu0 0.0
    %584 = vmatpush2.msra.mxu0 0.0
    %585 = vmatprep.subr.mxu0 0.0
    %586 = vmatpush2.msra.mxu0 0.0
    %587 = vmatprep.subr.mxu0 0.0
    %588 = vmatpush2.msra.mxu0 0.0
    %589 = vmatprep.subr.mxu0 0.0
    %590 = vmatpush2.msra.mxu0 0.0
    %591 = vmatprep.subr.mxu0 0.0
    %592 = vmatpush2.msra.mxu0 0.0
    %593 = vmatprep.subr.mxu0 0.0
    %594 = vmatpush2.msra.mxu0 0.0
    %595 = vmatprep.subr.mxu0 0.0
    %596 = vmatpush2.msra.mxu0 0.0
    %597 = vmatprep.subr.mxu0 0.0
    %598 = vmatpush2.msra.mxu0 0.0
    %599 = vmatprep.subr.mxu0 0.0
    %600 = vmatpush2.msra.mxu0 0.0
    %601 = vmatprep.subr.mxu0 0.0
    %602 = vmatpush2.msra.mxu0 0.0
    %603 = vmatprep.subr.mxu0 0.0
    %604 = vmatpush2.msra.mxu0 0.0
    %605 = vmatprep.subr.mxu0 0.0
    %606 = vmatpush2.msra.mxu0 0.0
    %607 = vmatprep.subr.mxu0 0.0
    %608 = vmatpush2.msra.mxu0 0.0
    %609 = vmatprep.subr.mxu0 0.0
    %610 = vmatpush2.msra.mxu0 0.0
    %611 = vmatprep.mubr.f32.mxu0 0.0
    %v612 = vand.u32 %v526, 4294901760
    %v613 = vsub.f32 %v526, %v612
    %v614 = vand.u32 %v613, 4294901760
    %v615 = vsub.f32 %v613, %v614
    %v616 = vand.u32 %v615, 4294901760
    %617 = vmatmul.mubr.f32.gmra.mxu0 %v616
    %v618 = vpop.f32.mrf.mxu0
    %v619 = vadd.f32 %v530, %v618
    %v620 = vpop.f32.mrf.mxu0
    %621 = vdwg.mxu0
    %622 = vmatprep.subr.mxu0 0.0
    %v623 = vand.u32 %v57, 4294901760
    %v624 = vsub.f32 %v57, %v623
    %v625 = vand.u32 %v624, 4294901760
    %v626 = vsub.f32 %v624, %v625
    %v627 = vand.u32 %v626, 4294901760
    %628 = vmatpush1.msra.mxu0 %v627
    %629 = vmatprep.subr.mxu0 0.0
    %v630 = vand.u32 %v56, 4294901760
    %v631 = vsub.f32 %v56, %v630
    %v632 = vand.u32 %v631, 4294901760
    %v633 = vsub.f32 %v631, %v632
    %v634 = vand.u32 %v633, 4294901760
    %635 = vmatpush1.msra.mxu0 %v634
    %636 = vmatprep.subr.mxu0 0.0
    %v637 = vand.u32 %v55, 4294901760
    %v638 = vsub.f32 %v55, %v637
    %v639 = vand.u32 %v638, 4294901760
    %v640 = vsub.f32 %v638, %v639
    %v641 = vand.u32 %v640, 4294901760
    %642 = vmatpush1.msra.mxu0 %v641
    %643 = vmatprep.subr.mxu0 0.0
    %v644 = vand.u32 %v54, 4294901760
    %v645 = vsub.f32 %v54, %v644
    %v646 = vand.u32 %v645, 4294901760
    %v647 = vsub.f32 %v645, %v646
    %v648 = vand.u32 %v647, 4294901760
    %649 = vmatpush1.msra.mxu0 %v648
    %650 = vmatprep.subr.mxu0 0.0
    %v651 = vand.u32 %v53, 4294901760
    %v652 = vsub.f32 %v53, %v651
    %v653 = vand.u32 %v652, 4294901760
    %v654 = vsub.f32 %v652, %v653
    %v655 = vand.u32 %v654, 4294901760
    %656 = vmatpush1.msra.mxu0 %v655
    %657 = vmatprep.subr.mxu0 0.0
    %v658 = vand.u32 %v52, 4294901760
    %v659 = vsub.f32 %v52, %v658
    %v660 = vand.u32 %v659, 4294901760
    %v661 = vsub.f32 %v659, %v660
    %v662 = vand.u32 %v661, 4294901760
    %663 = vmatpush1.msra.mxu0 %v662
    %664 = vmatprep.subr.mxu0 0.0
    %v665 = vand.u32 %v51, 4294901760
    %v666 = vsub.f32 %v51, %v665
    %v667 = vand.u32 %v666, 4294901760
    %v668 = vsub.f32 %v666, %v667
    %v669 = vand.u32 %v668, 4294901760
    %670 = vmatpush1.msra.mxu0 %v669
    %671 = vmatprep.subr.mxu0 0.0
    %v672 = vand.u32 %v50, 4294901760
    %v673 = vsub.f32 %v50, %v672
    %v674 = vand.u32 %v673, 4294901760
    %v675 = vsub.f32 %v673, %v674
    %v676 = vand.u32 %v675, 4294901760
    %677 = vmatpush1.msra.mxu0 %v676
    %678 = vmatprep.subr.mxu0 0.0
    %v679 = vand.u32 %v49, 4294901760
    %v680 = vsub.f32 %v49, %v679
    %v681 = vand.u32 %v680, 4294901760
    %v682 = vsub.f32 %v680, %v681
    %v683 = vand.u32 %v682, 4294901760
    %684 = vmatpush1.msra.mxu0 %v683
    %685 = vmatprep.subr.mxu0 0.0
    %v686 = vand.u32 %v48, 4294901760
    %v687 = vsub.f32 %v48, %v686
    %v688 = vand.u32 %v687, 4294901760
    %v689 = vsub.f32 %v687, %v688
    %v690 = vand.u32 %v689, 4294901760
    %691 = vmatpush1.msra.mxu0 %v690
    %692 = vmatprep.subr.mxu0 0.0
    %v693 = vand.u32 %v47, 4294901760
    %v694 = vsub.f32 %v47, %v693
    %v695 = vand.u32 %v694, 4294901760
    %v696 = vsub.f32 %v694, %v695
    %v697 = vand.u32 %v696, 4294901760
    %698 = vmatpush1.msra.mxu0 %v697
    %699 = vmatprep.subr.mxu0 0.0
    %v700 = vand.u32 %v46, 4294901760
    %v701 = vsub.f32 %v46, %v700
    %v702 = vand.u32 %v701, 4294901760
    %v703 = vsub.f32 %v701, %v702
    %v704 = vand.u32 %v703, 4294901760
    %705 = vmatpush1.msra.mxu0 %v704
    %706 = vmatprep.subr.mxu0 0.0
    %v707 = vand.u32 %v45, 4294901760
    %v708 = vsub.f32 %v45, %v707
    %v709 = vand.u32 %v708, 4294901760
    %v710 = vsub.f32 %v708, %v709
    %v711 = vand.u32 %v710, 4294901760
    %712 = vmatpush1.msra.mxu0 %v711
    %713 = vmatprep.subr.mxu0 0.0
    %v714 = vand.u32 %v44, 4294901760
    %v715 = vsub.f32 %v44, %v714
    %v716 = vand.u32 %v715, 4294901760
    %v717 = vsub.f32 %v715, %v716
    %v718 = vand.u32 %v717, 4294901760
    %719 = vmatpush1.msra.mxu0 %v718
    %720 = vmatprep.subr.mxu0 0.0
    %v721 = vand.u32 %v43, 4294901760
    %v722 = vsub.f32 %v43, %v721
    %v723 = vand.u32 %v722, 4294901760
    %v724 = vsub.f32 %v722, %v723
    %v725 = vand.u32 %v724, 4294901760
    %726 = vmatpush1.msra.mxu0 %v725
    %727 = vmatprep.subr.mxu0 0.0
    %v728 = vand.u32 %v42, 4294901760
    %v729 = vsub.f32 %v42, %v728
    %v730 = vand.u32 %v729, 4294901760
    %v731 = vsub.f32 %v729, %v730
    %v732 = vand.u32 %v731, 4294901760
    %733 = vmatpush1.msra.mxu0 %v732
    %734 = vmatprep.subr.mxu0 0.0
    %735 = vmatpush2.msra.mxu0 0.0
    %736 = vmatprep.subr.mxu0 0.0
    %737 = vmatpush2.msra.mxu0 0.0
    %738 = vmatprep.subr.mxu0 0.0
    %739 = vmatpush2.msra.mxu0 0.0
    %740 = vmatprep.subr.mxu0 0.0
    %741 = vmatpush2.msra.mxu0 0.0
    %742 = vmatprep.subr.mxu0 0.0
    %743 = vmatpush2.msra.mxu0 0.0
    %744 = vmatprep.subr.mxu0 0.0
    %745 = vmatpush2.msra.mxu0 0.0
    %746 = vmatprep.subr.mxu0 0.0
    %747 = vmatpush2.msra.mxu0 0.0
    %748 = vmatprep.subr.mxu0 0.0
    %749 = vmatpush2.msra.mxu0 0.0
    %750 = vmatprep.subr.mxu0 0.0
    %751 = vmatpush2.msra.mxu0 0.0
    %752 = vmatprep.subr.mxu0 0.0
    %753 = vmatpush2.msra.mxu0 0.0
    %754 = vmatprep.subr.mxu0 0.0
    %755 = vmatpush2.msra.mxu0 0.0
    %756 = vmatprep.subr.mxu0 0.0
    %757 = vmatpush2.msra.mxu0 0.0
    %758 = vmatprep.subr.mxu0 0.0
    %759 = vmatpush2.msra.mxu0 0.0
    %760 = vmatprep.subr.mxu0 0.0
    %761 = vmatpush2.msra.mxu0 0.0
    %762 = vmatprep.subr.mxu0 0.0
    %763 = vmatpush2.msra.mxu0 0.0
    %764 = vmatprep.subr.mxu0 0.0
    %765 = vmatpush2.msra.mxu0 0.0
    %766 = vmatprep.mubr.f32.mxu0 0.0
    %v767 = vand.u32 %v526, 4294901760
    %768 = vmatmul.mubr.f32.gmra.mxu0 %v767
    %v769 = vpop.f32.mrf.mxu0
    %v770 = vadd.f32 %v619, %v769
    %v771 = vpop.f32.mrf.mxu0
    %772 = vdwg.mxu0
    %773 = vmatprep.subr.mxu0 0.0
    %v774 = vand.u32 %v57, 4294901760
    %v775 = vsub.f32 %v57, %v774
    %776 = vmatpush1.msra.mxu0 %v775
    %777 = vmatprep.subr.mxu0 0.0
    %v778 = vand.u32 %v56, 4294901760
    %v779 = vsub.f32 %v56, %v778
    %780 = vmatpush1.msra.mxu0 %v779
    %781 = vmatprep.subr.mxu0 0.0
    %v782 = vand.u32 %v55, 4294901760
    %v783 = vsub.f32 %v55, %v782
    %784 = vmatpush1.msra.mxu0 %v783
    %785 = vmatprep.subr.mxu0 0.0
    %v786 = vand.u32 %v54, 4294901760
    %v787 = vsub.f32 %v54, %v786
    %788 = vmatpush1.msra.mxu0 %v787
    %789 = vmatprep.subr.mxu0 0.0
    %v790 = vand.u32 %v53, 4294901760
    %v791 = vsub.f32 %v53, %v790
    %792 = vmatpush1.msra.mxu0 %v791
    %793 = vmatprep.subr.mxu0 0.0
    %v794 = vand.u32 %v52, 4294901760
    %v795 = vsub.f32 %v52, %v794
    %796 = vmatpush1.msra.mxu0 %v795
    %797 = vmatprep.subr.mxu0 0.0
    %v798 = vand.u32 %v51, 4294901760
    %v799 = vsub.f32 %v51, %v798
    %800 = vmatpush1.msra.mxu0 %v799
    %801 = vmatprep.subr.mxu0 0.0
    %v802 = vand.u32 %v50, 4294901760
    %v803 = vsub.f32 %v50, %v802
    %804 = vmatpush1.msra.mxu0 %v803
    %805 = vmatprep.subr.mxu0 0.0
    %v806 = vand.u32 %v49, 4294901760
    %v807 = vsub.f32 %v49, %v806
    %808 = vmatpush1.msra.mxu0 %v807
    %809 = vmatprep.subr.mxu0 0.0
    %v810 = vand.u32 %v48, 4294901760
    %v811 = vsub.f32 %v48, %v810
    %812 = vmatpush1.msra.mxu0 %v811
    %813 = vmatprep.subr.mxu0 0.0
    %v814 = vand.u32 %v47, 4294901760
    %v815 = vsub.f32 %v47, %v814
    %816 = vmatpush1.msra.mxu0 %v815
    %817 = vmatprep.subr.mxu0 0.0
    %v818 = vand.u32 %v46, 4294901760
    %v819 = vsub.f32 %v46, %v818
    %820 = vmatpush1.msra.mxu0 %v819
    %821 = vmatprep.subr.mxu0 0.0
    %v822 = vand.u32 %v45, 4294901760
    %v823 = vsub.f32 %v45, %v822
    %824 = vmatpush1.msra.mxu0 %v823
    %825 = vmatprep.subr.mxu0 0.0
    %v826 = vand.u32 %v44, 4294901760
    %v827 = vsub.f32 %v44, %v826
    %828 = vmatpush1.msra.mxu0 %v827
    %829 = vmatprep.subr.mxu0 0.0
    %v830 = vand.u32 %v43, 4294901760
    %v831 = vsub.f32 %v43, %v830
    %832 = vmatpush1.msra.mxu0 %v831
    %833 = vmatprep.subr.mxu0 0.0
    %v834 = vand.u32 %v42, 4294901760
    %v835 = vsub.f32 %v42, %v834
    %836 = vmatpush1.msra.mxu0 %v835
    %837 = vmatprep.subr.mxu0 0.0
    %838 = vmatpush2.msra.mxu0 0.0
    %839 = vmatprep.subr.mxu0 0.0
    %840 = vmatpush2.msra.mxu0 0.0
    %841 = vmatprep.subr.mxu0 0.0
    %842 = vmatpush2.msra.mxu0 0.0
    %843 = vmatprep.subr.mxu0 0.0
    %844 = vmatpush2.msra.mxu0 0.0
    %845 = vmatprep.subr.mxu0 0.0
    %846 = vmatpush2.msra.mxu0 0.0
    %847 = vmatprep.subr.mxu0 0.0
    %848 = vmatpush2.msra.mxu0 0.0
    %849 = vmatprep.subr.mxu0 0.0
    %850 = vmatpush2.msra.mxu0 0.0
    %851 = vmatprep.subr.mxu0 0.0
    %852 = vmatpush2.msra.mxu0 0.0
    %853 = vmatprep.subr.mxu0 0.0
    %854 = vmatpush2.msra.mxu0 0.0
    %855 = vmatprep.subr.mxu0 0.0
    %856 = vmatpush2.msra.mxu0 0.0
    %857 = vmatprep.subr.mxu0 0.0
    %858 = vmatpush2.msra.mxu0 0.0
    %859 = vmatprep.subr.mxu0 0.0
    %860 = vmatpush2.msra.mxu0 0.0
    %861 = vmatprep.subr.mxu0 0.0
    %862 = vmatpush2.msra.mxu0 0.0
    %863 = vmatprep.subr.mxu0 0.0
    %864 = vmatpush2.msra.mxu0 0.0
    %865 = vmatprep.subr.mxu0 0.0
    %866 = vmatpush2.msra.mxu0 0.0
    %867 = vmatprep.subr.mxu0 0.0
    %868 = vmatpush2.msra.mxu0 0.0
    %869 = vmatprep.mubr.f32.mxu0 0.0
    %v870 = vand.u32 %v526, 4294901760
    %v871 = vsub.f32 %v526, %v870
    %872 = vmatmul.mubr.f32.gmra.mxu0 %v871
    %v873 = vpop.f32.mrf.mxu0
    %v874 = vadd.f32 %v770, %v873
    %v875 = vpop.f32.mrf.mxu0
    %876 = vdwg.mxu0
    %877 = vmatprep.subr.mxu0 0.0
    %v878 = vand.u32 %v57, 4294901760
    %879 = vmatpush1.msra.mxu0 %v878
    %880 = vmatprep.subr.mxu0 0.0
    %v881 = vand.u32 %v56, 4294901760
    %882 = vmatpush1.msra.mxu0 %v881
    %883 = vmatprep.subr.mxu0 0.0
    %v884 = vand.u32 %v55, 4294901760
    %885 = vmatpush1.msra.mxu0 %v884
    %886 = vmatprep.subr.mxu0 0.0
    %v887 = vand.u32 %v54, 4294901760
    %888 = vmatpush1.msra.mxu0 %v887
    %889 = vmatprep.subr.mxu0 0.0
    %v890 = vand.u32 %v53, 4294901760
    %891 = vmatpush1.msra.mxu0 %v890
    %892 = vmatprep.subr.mxu0 0.0
    %v893 = vand.u32 %v52, 4294901760
    %894 = vmatpush1.msra.mxu0 %v893
    %895 = vmatprep.subr.mxu0 0.0
    %v896 = vand.u32 %v51, 4294901760
    %897 = vmatpush1.msra.mxu0 %v896
    %898 = vmatprep.subr.mxu0 0.0
    %v899 = vand.u32 %v50, 4294901760
    %900 = vmatpush1.msra.mxu0 %v899
    %901 = vmatprep.subr.mxu0 0.0
    %v902 = vand.u32 %v49, 4294901760
    %903 = vmatpush1.msra.mxu0 %v902
    %904 = vmatprep.subr.mxu0 0.0
    %v905 = vand.u32 %v48, 4294901760
    %906 = vmatpush1.msra.mxu0 %v905
    %907 = vmatprep.subr.mxu0 0.0
    %v908 = vand.u32 %v47, 4294901760
    %909 = vmatpush1.msra.mxu0 %v908
    %910 = vmatprep.subr.mxu0 0.0
    %v911 = vand.u32 %v46, 4294901760
    %912 = vmatpush1.msra.mxu0 %v911
    %913 = vmatprep.subr.mxu0 0.0
    %v914 = vand.u32 %v45, 4294901760
    %915 = vmatpush1.msra.mxu0 %v914
    %916 = vmatprep.subr.mxu0 0.0
    %v917 = vand.u32 %v44, 4294901760
    %918 = vmatpush1.msra.mxu0 %v917
    %919 = vmatprep.subr.mxu0 0.0
    %v920 = vand.u32 %v43, 4294901760
    %921 = vmatpush1.msra.mxu0 %v920
    %922 = vmatprep.subr.mxu0 0.0
    %v923 = vand.u32 %v42, 4294901760
    %924 = vmatpush1.msra.mxu0 %v923
    %925 = vmatprep.subr.mxu0 0.0
    %926 = vmatpush2.msra.mxu0 0.0
    %927 = vmatprep.subr.mxu0 0.0
    %928 = vmatpush2.msra.mxu0 0.0
    %929 = vmatprep.subr.mxu0 0.0
    %930 = vmatpush2.msra.mxu0 0.0
    %931 = vmatprep.subr.mxu0 0.0
    %932 = vmatpush2.msra.mxu0 0.0
    %933 = vmatprep.subr.mxu0 0.0
    %934 = vmatpush2.msra.mxu0 0.0
    %935 = vmatprep.subr.mxu0 0.0
    %936 = vmatpush2.msra.mxu0 0.0
    %937 = vmatprep.subr.mxu0 0.0
    %938 = vmatpush2.msra.mxu0 0.0
    %939 = vmatprep.subr.mxu0 0.0
    %940 = vmatpush2.msra.mxu0 0.0
    %941 = vmatprep.subr.mxu0 0.0
    %942 = vmatpush2.msra.mxu0 0.0
    %943 = vmatprep.subr.mxu0 0.0
    %944 = vmatpush2.msra.mxu0 0.0
    %945 = vmatprep.subr.mxu0 0.0
    %946 = vmatpush2.msra.mxu0 0.0
    %947 = vmatprep.subr.mxu0 0.0
    %948 = vmatpush2.msra.mxu0 0.0
    %949 = vmatprep.subr.mxu0 0.0
    %950 = vmatpush2.msra.mxu0 0.0
    %951 = vmatprep.subr.mxu0 0.0
    %952 = vmatpush2.msra.mxu0 0.0
    %953 = vmatprep.subr.mxu0 0.0
    %954 = vmatpush2.msra.mxu0 0.0
    %955 = vmatprep.subr.mxu0 0.0
    %956 = vmatpush2.msra.mxu0 0.0
    %957 = vmatprep.mubr.f32.mxu0 0.0
    %v958 = vand.u32 %v526, 4294901760
    %v959 = vsub.f32 %v526, %v958
    %v960 = vand.u32 %v959, 4294901760
    %961 = vmatmul.mubr.f32.gmra.mxu0 %v960
    %v962 = vpop.f32.mrf.mxu0
    %v963 = vadd.f32 %v874, %v962
    %v964 = vpop.f32.mrf.mxu0
    %965 = vdwg.mxu0
    %966 = vmatprep.subr.mxu0 0.0
    %v967 = vand.u32 %v57, 4294901760
    %v968 = vsub.f32 %v57, %v967
    %v969 = vand.u32 %v968, 4294901760
    %970 = vmatpush1.msra.mxu0 %v969
    %971 = vmatprep.subr.mxu0 0.0
    %v972 = vand.u32 %v56, 4294901760
    %v973 = vsub.f32 %v56, %v972
    %v974 = vand.u32 %v973, 4294901760
    %975 = vmatpush1.msra.mxu0 %v974
    %976 = vmatprep.subr.mxu0 0.0
    %v977 = vand.u32 %v55, 4294901760
    %v978 = vsub.f32 %v55, %v977
    %v979 = vand.u32 %v978, 4294901760
    %980 = vmatpush1.msra.mxu0 %v979
    %981 = vmatprep.subr.mxu0 0.0
    %v982 = vand.u32 %v54, 4294901760
    %v983 = vsub.f32 %v54, %v982
    %v984 = vand.u32 %v983, 4294901760
    %985 = vmatpush1.msra.mxu0 %v984
    %986 = vmatprep.subr.mxu0 0.0
    %v987 = vand.u32 %v53, 4294901760
    %v988 = vsub.f32 %v53, %v987
    %v989 = vand.u32 %v988, 4294901760
    %990 = vmatpush1.msra.mxu0 %v989
    %991 = vmatprep.subr.mxu0 0.0
    %v992 = vand.u32 %v52, 4294901760
    %v993 = vsub.f32 %v52, %v992
    %v994 = vand.u32 %v993, 4294901760
    %995 = vmatpush1.msra.mxu0 %v994
    %996 = vmatprep.subr.mxu0 0.0
    %v997 = vand.u32 %v51, 4294901760
    %v998 = vsub.f32 %v51, %v997
    %v999 = vand.u32 %v998, 4294901760
    %1000 = vmatpush1.msra.mxu0 %v999
    %1001 = vmatprep.subr.mxu0 0.0
    %v1002 = vand.u32 %v50, 4294901760
    %v1003 = vsub.f32 %v50, %v1002
    %v1004 = vand.u32 %v1003, 4294901760
    %1005 = vmatpush1.msra.mxu0 %v1004
    %1006 = vmatprep.subr.mxu0 0.0
    %v1007 = vand.u32 %v49, 4294901760
    %v1008 = vsub.f32 %v49, %v1007
    %v1009 = vand.u32 %v1008, 4294901760
    %1010 = vmatpush1.msra.mxu0 %v1009
    %1011 = vmatprep.subr.mxu0 0.0
    %v1012 = vand.u32 %v48, 4294901760
    %v1013 = vsub.f32 %v48, %v1012
    %v1014 = vand.u32 %v1013, 4294901760
    %1015 = vmatpush1.msra.mxu0 %v1014
    %1016 = vmatprep.subr.mxu0 0.0
    %v1017 = vand.u32 %v47, 4294901760
    %v1018 = vsub.f32 %v47, %v1017
    %v1019 = vand.u32 %v1018, 4294901760
    %1020 = vmatpush1.msra.mxu0 %v1019
    %1021 = vmatprep.subr.mxu0 0.0
    %v1022 = vand.u32 %v46, 4294901760
    %v1023 = vsub.f32 %v46, %v1022
    %v1024 = vand.u32 %v1023, 4294901760
    %1025 = vmatpush1.msra.mxu0 %v1024
    %1026 = vmatprep.subr.mxu0 0.0
    %v1027 = vand.u32 %v45, 4294901760
    %v1028 = vsub.f32 %v45, %v1027
    %v1029 = vand.u32 %v1028, 4294901760
    %1030 = vmatpush1.msra.mxu0 %v1029
    %1031 = vmatprep.subr.mxu0 0.0
    %v1032 = vand.u32 %v44, 4294901760
    %v1033 = vsub.f32 %v44, %v1032
    %v1034 = vand.u32 %v1033, 4294901760
    %1035 = vmatpush1.msra.mxu0 %v1034
    %1036 = vmatprep.subr.mxu0 0.0
    %v1037 = vand.u32 %v43, 4294901760
    %v1038 = vsub.f32 %v43, %v1037
    %v1039 = vand.u32 %v1038, 4294901760
    %1040 = vmatpush1.msra.mxu0 %v1039
    %1041 = vmatprep.subr.mxu0 0.0
    %v1042 = vand.u32 %v42, 4294901760
    %v1043 = vsub.f32 %v42, %v1042
    %v1044 = vand.u32 %v1043, 4294901760
    %1045 = vmatpush1.msra.mxu0 %v1044
    %1046 = vmatprep.subr.mxu0 0.0
    %1047 = vmatpush2.msra.mxu0 0.0
    %1048 = vmatprep.subr.mxu0 0.0
    %1049 = vmatpush2.msra.mxu0 0.0
    %1050 = vmatprep.subr.mxu0 0.0
    %1051 = vmatpush2.msra.mxu0 0.0
    %1052 = vmatprep.subr.mxu0 0.0
    %1053 = vmatpush2.msra.mxu0 0.0
    %1054 = vmatprep.subr.mxu0 0.0
    %1055 = vmatpush2.msra.mxu0 0.0
    %1056 = vmatprep.subr.mxu0 0.0
    %1057 = vmatpush2.msra.mxu0 0.0
    %1058 = vmatprep.subr.mxu0 0.0
    %1059 = vmatpush2.msra.mxu0 0.0
    %1060 = vmatprep.subr.mxu0 0.0
    %1061 = vmatpush2.msra.mxu0 0.0
    %1062 = vmatprep.subr.mxu0 0.0
    %1063 = vmatpush2.msra.mxu0 0.0
    %1064 = vmatprep.subr.mxu0 0.0
    %1065 = vmatpush2.msra.mxu0 0.0
    %1066 = vmatprep.subr.mxu0 0.0
    %1067 = vmatpush2.msra.mxu0 0.0
    %1068 = vmatprep.subr.mxu0 0.0
    %1069 = vmatpush2.msra.mxu0 0.0
    %1070 = vmatprep.subr.mxu0 0.0
    %1071 = vmatpush2.msra.mxu0 0.0
    %1072 = vmatprep.subr.mxu0 0.0
    %1073 = vmatpush2.msra.mxu0 0.0
    %1074 = vmatprep.subr.mxu0 0.0
    %1075 = vmatpush2.msra.mxu0 0.0
    %1076 = vmatprep.subr.mxu0 0.0
    %1077 = vmatpush2.msra.mxu0 0.0
    %1078 = vmatprep.mubr.f32.mxu0 0.0
    %v1079 = vand.u32 %v526, 4294901760
    %1080 = vmatmul.mubr.f32.gmra.mxu0 %v1079
    %v1081 = vpop.f32.mrf.mxu0
    %v1082 = vadd.f32 %v963, %v1081
    %v1083 = vpop.f32.mrf.mxu0
    %1084 = vdwg.mxu0
    %1085 = vmatprep.subr.mxu0 0.0
    %v1086 = vand.u32 %v57, 4294901760
    %1087 = vmatpush1.msra.mxu0 %v1086
    %1088 = vmatprep.subr.mxu0 0.0
    %v1089 = vand.u32 %v56, 4294901760
    %1090 = vmatpush1.msra.mxu0 %v1089
    %1091 = vmatprep.subr.mxu0 0.0
    %v1092 = vand.u32 %v55, 4294901760
    %1093 = vmatpush1.msra.mxu0 %v1092
    %1094 = vmatprep.subr.mxu0 0.0
    %v1095 = vand.u32 %v54, 4294901760
    %1096 = vmatpush1.msra.mxu0 %v1095
    %1097 = vmatprep.subr.mxu0 0.0
    %v1098 = vand.u32 %v53, 4294901760
    %1099 = vmatpush1.msra.mxu0 %v1098
    %1100 = vmatprep.subr.mxu0 0.0
    %v1101 = vand.u32 %v52, 4294901760
    %1102 = vmatpush1.msra.mxu0 %v1101
    %1103 = vmatprep.subr.mxu0 0.0
    %v1104 = vand.u32 %v51, 4294901760
    %1105 = vmatpush1.msra.mxu0 %v1104
    %1106 = vmatprep.subr.mxu0 0.0
    %v1107 = vand.u32 %v50, 4294901760
    %1108 = vmatpush1.msra.mxu0 %v1107
    %1109 = vmatprep.subr.mxu0 0.0
    %v1110 = vand.u32 %v49, 4294901760
    %1111 = vmatpush1.msra.mxu0 %v1110
    %1112 = vmatprep.subr.mxu0 0.0
    %v1113 = vand.u32 %v48, 4294901760
    %1114 = vmatpush1.msra.mxu0 %v1113
    %1115 = vmatprep.subr.mxu0 0.0
    %v1116 = vand.u32 %v47, 4294901760
    %1117 = vmatpush1.msra.mxu0 %v1116
    %1118 = vmatprep.subr.mxu0 0.0
    %v1119 = vand.u32 %v46, 4294901760
    %1120 = vmatpush1.msra.mxu0 %v1119
    %1121 = vmatprep.subr.mxu0 0.0
    %v1122 = vand.u32 %v45, 4294901760
    %1123 = vmatpush1.msra.mxu0 %v1122
    %1124 = vmatprep.subr.mxu0 0.0
    %v1125 = vand.u32 %v44, 4294901760
    %1126 = vmatpush1.msra.mxu0 %v1125
    %1127 = vmatprep.subr.mxu0 0.0
    %v1128 = vand.u32 %v43, 4294901760
    %1129 = vmatpush1.msra.mxu0 %v1128
    %1130 = vmatprep.subr.mxu0 0.0
    %v1131 = vand.u32 %v42, 4294901760
    %1132 = vmatpush1.msra.mxu0 %v1131
    %1133 = vmatprep.subr.mxu0 0.0
    %1134 = vmatpush2.msra.mxu0 0.0
    %1135 = vmatprep.subr.mxu0 0.0
    %1136 = vmatpush2.msra.mxu0 0.0
    %1137 = vmatprep.subr.mxu0 0.0
    %1138 = vmatpush2.msra.mxu0 0.0
    %1139 = vmatprep.subr.mxu0 0.0
    %1140 = vmatpush2.msra.mxu0 0.0
    %1141 = vmatprep.subr.mxu0 0.0
    %1142 = vmatpush2.msra.mxu0 0.0
    %1143 = vmatprep.subr.mxu0 0.0
    %1144 = vmatpush2.msra.mxu0 0.0
    %1145 = vmatprep.subr.mxu0 0.0
    %1146 = vmatpush2.msra.mxu0 0.0
    %1147 = vmatprep.subr.mxu0 0.0
    %1148 = vmatpush2.msra.mxu0 0.0
    %1149 = vmatprep.subr.mxu0 0.0
    %1150 = vmatpush2.msra.mxu0 0.0
    %1151 = vmatprep.subr.mxu0 0.0
    %1152 = vmatpush2.msra.mxu0 0.0
    %1153 = vmatprep.subr.mxu0 0.0
    %1154 = vmatpush2.msra.mxu0 0.0
    %1155 = vmatprep.subr.mxu0 0.0
    %1156 = vmatpush2.msra.mxu0 0.0
    %1157 = vmatprep.subr.mxu0 0.0
    %1158 = vmatpush2.msra.mxu0 0.0
    %1159 = vmatprep.subr.mxu0 0.0
    %1160 = vmatpush2.msra.mxu0 0.0
    %1161 = vmatprep.subr.mxu0 0.0
    %1162 = vmatpush2.msra.mxu0 0.0
    %1163 = vmatprep.subr.mxu0 0.0
    %1164 = vmatpush2.msra.mxu0 0.0
    %1165 = vmatprep.mubr.f32.mxu0 0.0
    %v1166 = vand.u32 %v526, 4294901760
    %1167 = vmatmul.mubr.f32.gmra.mxu0 %v1166
    %v1168 = vpop.f32.mrf.mxu0
    %v1169 = vadd.f32 %v1082, %v1168
    %v1170 = vpop.f32.mrf.mxu0
    %1171 = vdwg.mxu0
    %v1172 = vlaneseq
    %v1173 = vand.u32 %v1172, 127
    %vm1174 = vcmp.lt.s32.totalorder %v1173, 4
    %v1175 = vsel %vm1174, %v1169, -inf
    %1176 = vmax.xlane.f32.xlu0 %v1175
    %v1177 = vpop.xlane.xlu0 %1176
    %v1178 = vsub.f32 %v1169, %v1177
    %v1179 = vmul.f32 %v1178, 1.442695
    %v1180 = vpow.pop %v1179
    %v1181 = vsel %vm1174, %v1180, 0.0
    %1182 = vadd.xlane.f32.xlu0 %v1181
    %v1183 = vpop.xlane.xlu0 %1182
    %v1184 = vrcp.pop %v1183
    %v1185 = vmul.f32 %v1181, %v1184
    %v1186 = vsel %vm1174, %v1185, %v1169
    %1187 = vst [vmem:[#allocation7] sm:$0xff] %v1186
    // Predicated region
    $region18: #{tpu_custom_call.1} parent=1 // pred_check
      _
    $region19: #{tpu_custom_call.1} parent=1 // pred_check_branch
      %1189 = sbr.rel (0) target = $region21
    $region20: #{tpu_custom_call.1} parent=1 // pred_region
      %s1191 = ssub.s32 128, 128
      %1192 = vsyncadd [#allocation4], %s1191
      %s1194 = sshll.u32 [#allocation7], 4
      %s1195 = int_to_ptr.vmem [resolvable:$true] %s1194
      %1197 = dma.vmem_to_hbm [thread:$0]  %s1195, 128, %s2, [#allocation4]
    $region21: #{tpu_custom_call.1} parent=1 // pred_fallthru
      _
    // Predicated region
    $region22: #{tpu_custom_call.1} parent=1 // pred_check
      _
    $region23: #{tpu_custom_call.1} parent=1 // pred_check_branch
      %1199 = sbr.rel (0) target = $region25
    $region24: #{tpu_custom_call.1} parent=1 // pred_region
      %1200 = dma.done [#allocation4], 128
    $region25: #{tpu_custom_call.1} parent=1 // pred_fallthru
      _
    %1201 = vsyncpa [#allocation3], 1
    %1202 = vsyncpa [#allocation6], 1
    %1203 = vsyncpa [#allocation4], 1

</llo_original>
